<compile_context>
chip_gen: v7x
topology: tpu7x:2x2x1
jax: 0.10.0
libtpu: 0.0.40
codegen_flags: <defaults>
</compile_context>

<pallas_src>
import functools

import jax
import jax.numpy as jnp
from jax import lax
from jax.experimental import pallas as pl
from jax.experimental.pallas import tpu as pltpu


def _ln_kernel(*refs, eps, residual_weight, has_weight, has_bias):
    # refs = (x_ref, [w_ref], [b_ref], o_ref)
    idx = 0
    x_ref = refs[idx]; idx += 1
    w_ref = None
    b_ref = None
    if has_weight:
        w_ref = refs[idx]; idx += 1
    if has_bias:
        b_ref = refs[idx]; idx += 1
    o_ref = refs[idx]

    x = x_ref[...].astype(jnp.float32)                 # (block_rows, D)
    d = x.shape[-1]
    inv_d = jnp.float32(1.0 / d)

    # Single-pass sums: mean and E[x^2] computed from one load of x.
    s = jnp.sum(x, axis=-1, keepdims=True)
    ss = jnp.sum(x * x, axis=-1, keepdims=True)
    mean = s * inv_d
    var = jnp.maximum(ss * inv_d - mean * mean, 0.0)   # biased variance (F.layer_norm)
    inv_std = lax.rsqrt(var + jnp.float32(eps))

    y = (x - mean) * inv_std
    if has_weight:
        w = w_ref[...].astype(jnp.float32)             # (1, D), broadcasts over rows
        if residual_weight:
            w = 1.0 + w
        y = y * w
    if has_bias:
        y = y + b_ref[...].astype(jnp.float32)

    o_ref[...] = y.astype(o_ref.dtype)


def _choose_block_rows(n_rows, d, itemsize, target_tile_bytes=2 * 1024 * 1024):
    """Pick a row-tile size: ~target bytes of input per tile, multiple of 8."""
    if n_rows <= 8:
        return n_rows                                  # single (full-extent) block
    rows = target_tile_bytes // max(1, d * itemsize)
    rows = max(8, (rows // 8) * 8)
    rows = min(rows, 8192)                             # bound f32 intermediates
    rows = min(rows, (n_rows // 8) * 8)                # block never exceeds array rows
    return max(rows, 8)


def layer_norm(x, weight=None, bias=None, *, eps=1e-5, residual_weight=True,
               block_rows=None):
    """LayerNorm over the last axis of `x` (matches the PyTorch module forward).

    x:      (..., D)
    weight: (D,) or None  (effective scale = 1 + weight if residual_weight)
    bias:   (D,) or None
    """
    orig_shape = x.shape
    D = orig_shape[-1]
    x2 = x.reshape(-1, D)                              # free for contiguous input
    N = x2.shape[0]

    has_weight = weight is not None
    has_bias = bias is not None

    if block_rows is None:
        block_rows = _choose_block_rows(N, D, x2.dtype.itemsize)

    kernel = functools.partial(
        _ln_kernel, eps=eps, residual_weight=residual_weight,
        has_weight=has_weight, has_bias=has_bias,
    )

    operands = [x2]
    in_specs = [pl.BlockSpec((block_rows, D), lambda i: (i, 0))]
    if has_weight:
        operands.append(weight.reshape(1, D))
        in_specs.append(pl.BlockSpec((1, D), lambda i: (0, 0)))
    if has_bias:
        operands.append(bias.reshape(1, D))
        in_specs.append(pl.BlockSpec((1, D), lambda i: (0, 0)))

    # VMEM budget: 2x double-buffered in + 2x out tiles + f32 working set.
    tile_bytes = block_rows * D * x2.dtype.itemsize
    f32_bytes = block_rows * D * 4
    needed = 4 * tile_bytes + 4 * f32_bytes + (1 << 20)
    vmem_limit = int(min(max(needed, 16 << 20), 48 << 20))

    grid = (pl.cdiv(N, block_rows),)                   # no host-side padding copy
    out = pl.pallas_call(
        kernel,
        out_shape=jax.ShapeDtypeStruct((N, D), x.dtype),
        grid_spec=pltpu.PrefetchScalarGridSpec(
            num_scalar_prefetch=0,
            grid=grid,
            in_specs=in_specs,
            out_specs=pl.BlockSpec((block_rows, D), lambda i: (i, 0)),
        ),
        compiler_params=pltpu.CompilerParams(
            dimension_semantics=("parallel",),          # shards rows across TCs (v7x)
            vmem_limit_bytes=vmem_limit,
        ),
    )(*operands)

    return out.reshape(orig_shape)


if __name__ == "__main__":
    # Module defaults: weight=True, bias=False, eps=1e-5, residual_weight=True
    # reset_parameters() -> weight initialized to zeros (effective scale = 1 + 0 = 1)
    B, S, D = 2, 8, 32
    key = jax.random.PRNGKey(0)
    x = jax.random.normal(key, (B, S, D), dtype=jnp.float32)

    weight = jnp.zeros((D,), jnp.float32)   # deterministic init matching reset_parameters
    bias = None                             # bias=False

    out = layer_norm(x, weight, bias, eps=1e-5, residual_weight=True)
    out = jax.block_until_ready(out)

    # Reference check in plain JAX (same semantics as F.layer_norm)
    mean = jnp.mean(x, axis=-1, keepdims=True)
    var = jnp.mean((x - mean) ** 2, axis=-1, keepdims=True)
    ref = (x - mean) / jnp.sqrt(var + 1e-5) * (1.0 + weight)
    assert jnp.allclose(out, ref, atol=1e-5, rtol=1e-5), "mismatch vs reference"

    print("KERNEL_OK")
</pallas_src>

<mosaic_0001>
module attributes {stable_mosaic.version = 11 : i64} {
  func.func @_ln_kernel(%arg0: i32, %arg1: memref<16x32xf32, #tpu.memory_space<vmem>>, %arg2: memref<1x32xf32, #tpu.memory_space<vmem>>, %arg3: memref<16x32xf32, #tpu.memory_space<vmem>>) attributes {dimension_semantics = [#tpu.dimension_semantics<parallel>], iteration_bounds = array<i64: 1>, scalar_prefetch = 0 : i64, scratch_operands = 0 : i64, tpu.core_type = #tpu.core_type<tc>, window_params = [{transform_indices = @transform_0, window_bounds = array<i64: 16, 32>}, {pipeline_mode = #tpu.pipeline_mode<synchronous>, transform_indices = @transform_1, window_bounds = array<i64: 1, 32>}, {transform_indices = @transform_2, window_bounds = array<i64: 16, 32>}]} {
    %c0 = arith.constant 0 : index
    %c0_0 = arith.constant 0 : index
    %0 = vector.load %arg1[%c0, %c0_0] : memref<16x32xf32, #tpu.memory_space<vmem>>, vector<16x32xf32>
    %cst = arith.constant dense<0.000000e+00> : vector<16xf32>
    %1 = vector.multi_reduction <add>, %0, %cst [1] : vector<16x32xf32> to vector<16xf32>
    %2 = vector.shape_cast %1 : vector<16xf32> to vector<16x1xf32>
    %3 = arith.mulf %0, %0 : vector<16x32xf32>
    %cst_1 = arith.constant dense<0.000000e+00> : vector<16xf32>
    %4 = vector.multi_reduction <add>, %3, %cst_1 [1] : vector<16x32xf32> to vector<16xf32>
    %5 = vector.shape_cast %4 : vector<16xf32> to vector<16x1xf32>
    %cst_2 = arith.constant 3.125000e-02 : f32
    %6 = vector.broadcast %cst_2 : f32 to vector<16x1xf32>
    %7 = arith.mulf %2, %6 : vector<16x1xf32>
    %cst_3 = arith.constant 3.125000e-02 : f32
    %8 = vector.broadcast %cst_3 : f32 to vector<16x1xf32>
    %9 = arith.mulf %5, %8 : vector<16x1xf32>
    %10 = arith.mulf %7, %7 : vector<16x1xf32>
    %11 = arith.subf %9, %10 : vector<16x1xf32>
    %cst_4 = arith.constant 0.000000e+00 : f32
    %12 = vector.broadcast %cst_4 : f32 to vector<16x1xf32>
    %13 = arith.maximumf %11, %12 : vector<16x1xf32>
    %cst_5 = arith.constant 9.99999974E-6 : f32
    %14 = vector.broadcast %cst_5 : f32 to vector<16x1xf32>
    %15 = arith.addf %13, %14 : vector<16x1xf32>
    %16 = math.rsqrt %15 : vector<16x1xf32>
    %17 = vector.broadcast %7 : vector<16x1xf32> to vector<16x32xf32>
    %18 = arith.subf %0, %17 : vector<16x32xf32>
    %19 = vector.broadcast %16 : vector<16x1xf32> to vector<16x32xf32>
    %20 = arith.mulf %18, %19 : vector<16x32xf32>
    %c0_6 = arith.constant 0 : index
    %c0_7 = arith.constant 0 : index
    %21 = vector.load %arg2[%c0_6, %c0_7] : memref<1x32xf32, #tpu.memory_space<vmem>>, vector<1x32xf32>
    %cst_8 = arith.constant 1.000000e+00 : f32
    %22 = vector.broadcast %cst_8 : f32 to vector<1x32xf32>
    %23 = arith.addf %22, %21 : vector<1x32xf32>
    %24 = vector.broadcast %23 : vector<1x32xf32> to vector<16x32xf32>
    %25 = arith.mulf %20, %24 : vector<16x32xf32>
    %c0_9 = arith.constant 0 : index
    %c0_10 = arith.constant 0 : index
    %26 = vector.load %arg3[%c0_9, %c0_10] : memref<16x32xf32, #tpu.memory_space<vmem>>, vector<16x32xf32>
    tpu.vector_store %arg3[%c0_9, %c0_10], %25 {strides = array<i32>} : memref<16x32xf32, #tpu.memory_space<vmem>>, vector<16x32xf32>,
    return
  }
  func.func @transform_0(%arg0: i32) -> (i32, i32) {
    %c0_i32 = arith.constant 0 : i32
    %c0_i32_0 = arith.constant 0 : i32
    return %arg0, %c0_i32 : i32, i32
  }
  func.func @transform_1(%arg0: i32) -> (i32, i32) {
    %c0_i32 = arith.constant 0 : i32
    %c0_i32_0 = arith.constant 0 : i32
    %c0_i32_1 = arith.constant 0 : i32
    return %c0_i32, %c0_i32_0 : i32, i32
  }
  func.func @transform_2(%arg0: i32) -> (i32, i32) {
    %c0_i32 = arith.constant 0 : i32
    %c0_i32_0 = arith.constant 0 : i32
    return %arg0, %c0_i32 : i32, i32
  }
}

</mosaic_0001>

<llo_original>
// kernel: tpu_custom_call.1
$region0: #{tpu_custom_call.1}
  #allocation0 [shape = 'u32[]', space=smem, size = 0x4, offset = 0x4, fixed_abs, tag = 'smem constant byte address 0x4 - core index']
  #allocation1 [shape = 'u32[144,128]{1,0:T(1,128)}', space=vmem, size = 0x12000, scoped, tag = 'internal scratch']
  %s0 = inlined_call_operand.hbm [shape: f32[16,32], index: 0, kind: input, shape index: {}]
  %s1 = inlined_call_operand.vmem [shape: f32[1,32], index: 1, kind: input, shape index: {}]
  %s2 = inlined_call_operand.hbm [shape: f32[16,32], index: 2, kind: output, shape index: {}]
  %s3 = sld [smem:[#allocation0]]
  $region22: #{tpu_custom_call.1} parent=0
    _
  %s5 = ssub.s32 1, %s3
  %s6 = scalar_select 0, %s5, %s3
  $region1: #{tpu_custom_call.1} parent=0
    #allocation2 [shape = 'u8[8192]{0}', space=vmem, size = 0x2000, scoped, tag = 'input window, operand 0, single buffered']
    #allocation3 [shape = 's32[1]{0}', space=sflag, size = 0x4, scoped, tag = 'scoped memory for tpu_custom_call.1']
    #allocation4 [shape = 's32[1]{0}', space=sflag, size = 0x4, scoped, tag = 'scoped memory for tpu_custom_call.1']
    #allocation5 [shape = 'u8[8192]{0}', space=vmem, size = 0x2000, scoped, tag = 'output window, operand 0, single buffered']
    %7 = vsyncpa [#allocation3], 0
    %8 = vsyncpa [#allocation4], 0
    // Predicated region
    $region2: #{tpu_custom_call.1} parent=1 // pred_check
      _
    $region3: #{tpu_custom_call.1} parent=1 // pred_check_branch
      %10 = sbr.rel (0) target = $region5
    $region4: #{tpu_custom_call.1} parent=1 // pred_region
      %s12 = ssub.s32 256, 256
      %13 = vsyncadd [#allocation3], %s12
      %s14 = sshll.u32 [#allocation2], 4
      %s15 = int_to_ptr.vmem [resolvable:$true] %s14
      %20 = dma.hbm_to_vmem [thread:$0]  %s0, 256, %s15, [#allocation3], 128, 128, 8
    $region5: #{tpu_custom_call.1} parent=1 // pred_fallthru
      _
    // Predicated region
    $region6: #{tpu_custom_call.1} parent=1 // pred_check
      _
    $region7: #{tpu_custom_call.1} parent=1 // pred_check_branch
      %22 = sbr.rel (0) target = $region9
    $region8: #{tpu_custom_call.1} parent=1 // pred_region
      _
    $region9: #{tpu_custom_call.1} parent=1 // pred_fallthru
      _
    // Predicated region
    $region10: #{tpu_custom_call.1} parent=1 // pred_check
      _
    $region11: #{tpu_custom_call.1} parent=1 // pred_check_branch
      %24 = sbr.rel (0) target = $region13
    $region12: #{tpu_custom_call.1} parent=1 // pred_region
      %25 = dma.done [#allocation3], 256
    $region13: #{tpu_custom_call.1} parent=1 // pred_fallthru
      _
    %v26 = vld [vmem:[#allocation2] sm:$0xff]
    %v27 = vld [vmem:[#allocation2 + $0x8] sm:$0xff]
    %vm28 = vcmask 261120
    %v29 = vsel %vm28, %v26, 0.0
    %30 = vadd.xlane.f32.xlu0 %v29
    %v31 = vpop.xlane.xlu0 %30
    %v32 = vsel %vm28, %v27, 0.0
    %33 = vadd.xlane.f32.xlu0 %v32
    %v34 = vpop.xlane.xlu0 %33
    %v35 = vmul.f32 %v26, %v26
    %v36 = vmul.f32 %v27, %v27
    %v37 = vsel %vm28, %v35, 0.0
    %38 = vadd.xlane.f32.xlu0 %v37
    %v39 = vpop.xlane.xlu0 %38
    %v40 = vsel %vm28, %v36, 0.0
    %41 = vadd.xlane.f32.xlu0 %v40
    %v42 = vpop.xlane.xlu0 %41
    %v43 = vmul.f32 %v31, 0.03125
    %v44 = vmul.f32 %v34, 0.03125
    %v45 = vmul.f32 %v39, 0.03125
    %v46 = vmul.f32 %v42, 0.03125
    %v47 = vmul.f32 %v43, %v43
    %v48 = vmul.f32 %v44, %v44
    %v49 = vsub.f32 %v45, %v47
    %v50 = vsub.f32 %v46, %v48
    %v51 = vmax.f32 %v49, 0.0
    %v52 = vmax.f32 %v50, 0.0
    %v53 = vadd.f32 %v51, 1e-05
    %v54 = vadd.f32 %v52, 1e-05
    %v55 = vrsqrt.pop %v53
    %v56 = vrsqrt.pop %v54
    %v57 = vsub.f32 %v26, %v43
    %v58 = vsub.f32 %v27, %v44
    %v59 = vmul.f32 %v57, %v55
    %v60 = vmul.f32 %v58, %v56
    %v61 = vld [vmem:[%s1] sm:$0x1]
    %v62 = vadd.f32 %v61, 1.0
    %v64 = vlaneseq
    %v65 = vshrl.u32 %v64, 7
    %v66 = vsub.s32 0, %v65
    %v67 = vrot.slane %v62, %v66
    %v69 = vmul.f32 %v59, %v67
    %v70 = vmul.f32 %v60, %v67
    %71 = vst.msk [vmem:[#allocation5] sm:$0xff] %vm28, %v69
    %72 = vst.msk [vmem:[#allocation5 + $0x8] sm:$0xff] %vm28, %v70
    // Predicated region
    $region14: #{tpu_custom_call.1} parent=1 // pred_check
      _
    $region15: #{tpu_custom_call.1} parent=1 // pred_check_branch
      %74 = sbr.rel (0) target = $region17
    $region16: #{tpu_custom_call.1} parent=1 // pred_region
      %s76 = ssub.s32 256, 256
      %77 = vsyncadd [#allocation4], %s76
      %s78 = sshll.u32 [#allocation5], 4
      %s79 = int_to_ptr.vmem [resolvable:$true] %s78
      %84 = dma.vmem_to_hbm [thread:$0]  %s79, 256, %s2, [#allocation4], 128, 128, 8
    $region17: #{tpu_custom_call.1} parent=1 // pred_fallthru
      _
    // Predicated region
    $region18: #{tpu_custom_call.1} parent=1 // pred_check
      _
    $region19: #{tpu_custom_call.1} parent=1 // pred_check_branch
      %86 = sbr.rel (0) target = $region21
    $region20: #{tpu_custom_call.1} parent=1 // pred_region
      %87 = dma.done [#allocation4], 256
    $region21: #{tpu_custom_call.1} parent=1 // pred_fallthru
      _
    %88 = vsyncpa [#allocation3], 1
    %89 = vsyncpa [#allocation4], 1

</llo_original>
